<compile_context>
chip_gen: v5e
topology: v5e:2x2
jax: 0.10.0
libtpu: 0.0.40
codegen_flags: <defaults>
</compile_context>

<pallas_src>
import jax
import jax.numpy as jnp
from jax.experimental import pallas as pl
from jax.experimental.pallas import tpu as pltpu


def linear_relu_kernel(x_ref, w_ref, b_ref, o_ref):
    # One MXU pass on (BP, K) x (K, OUT_pad) + bias add & ReLU on the VPU.
    y = jnp.dot(x_ref[...], w_ref[...], preferred_element_type=jnp.float32)
    y = y + b_ref[...]
    o_ref[...] = jnp.maximum(y, 0.0).astype(o_ref.dtype)


def prepare_params(w, b):
    """One-time parameter prep (NOT on the per-call hot path).

    w: [OUT, IN] (PyTorch nn.Linear layout), b: [OUT].
    Returns weight transposed to [IN, OUT_pad] and bias [1, OUT_pad], with the
    OUT dim zero-padded to a multiple of 128 so the kernel's output store is
    lane-dense.  Padding is exact: padded lanes produce relu(0 + 0) = 0 and
    are sliced off after the call.
    """
    OUT, IN = w.shape
    OUTP = 128 * pl.cdiv(OUT, 128)
    w_p = jnp.zeros((IN, OUTP), jnp.float32).at[:, :OUT].set(w.T)
    b_p = jnp.zeros((1, OUTP), jnp.float32).at[:, :OUT].set(b.reshape(1, OUT))
    return w_p, b_p


def simple_model_forward(x, w_p, b_p, out_features):
    """x: [B, IN] f32, w_p: [IN, OUT_pad] f32, b_p: [1, OUT_pad] f32 -> [B, OUT]."""
    B, IN = x.shape
    OUTP = w_p.shape[1]

    # Per-call padding: at most the batch (sublane) dim of x.  K=IN stays
    # unpadded — full-array BlockSpecs are exempt from the (8,128) rule and
    # Mosaic pads the contraction internally.
    BP = 8 * pl.cdiv(B, 8)
    x_p = x if BP == B else jnp.zeros((BP, IN), jnp.float32).at[:B, :].set(x)

    out_p = pl.pallas_call(
        linear_relu_kernel,
        out_shape=jax.ShapeDtypeStruct((BP, OUTP), jnp.float32),
        # No grid: whole (tiny) arrays live in VMEM; no pipeline machinery.
        in_specs=[
            pl.BlockSpec(memory_space=pltpu.MemorySpace.VMEM),
            pl.BlockSpec(memory_space=pltpu.MemorySpace.VMEM),
            pl.BlockSpec(memory_space=pltpu.MemorySpace.VMEM),
        ],
        out_specs=pl.BlockSpec(memory_space=pltpu.MemorySpace.VMEM),
    )(x_p, w_p, b_p)

    # TODO(synk): at realistic batch sizes, switch to a "parallel" batch grid
    # axis (block (TB, IN); weight/bias resident via index_map -> (0, 0)),
    # TB >= 512 rows, bf16 operands with f32 accumulation, and size TB against
    # the per-generation VMEM budget (v5e 16 MiB scoped, v6e 32 MiB,
    # v7x 64 MiB physical / 32 MiB scoped).
    return out_p[:B, :out_features]


if __name__ == "__main__":
    key = jax.random.PRNGKey(0)
    k_x, k_w, k_b = jax.random.split(key, 3)

    B, IN, OUT = 2, 10, 5

    # Example input, matches torch.randn(2, 10)
    x = jax.random.normal(k_x, (B, IN), dtype=jnp.float32)

    # Deterministic parameter init mimicking nn.Linear default:
    # uniform(-1/sqrt(in_features), 1/sqrt(in_features))
    bound = 1.0 / jnp.sqrt(jnp.float32(IN))
    w = jax.random.uniform(k_w, (OUT, IN), minval=-bound, maxval=bound,
                           dtype=jnp.float32)   # PyTorch layout [out, in]
    b = jax.random.uniform(k_b, (OUT,), minval=-bound, maxval=bound,
                           dtype=jnp.float32)

    # One-time parameter prep (off the hot path).
    w_p, b_p = prepare_params(w, b)
    w_p, b_p = jax.block_until_ready((w_p, b_p))

    out = simple_model_forward(x, w_p, b_p, OUT)
    out = jax.block_until_ready(out)

    # Cross-check against plain JAX reference.
    ref = jnp.maximum(x @ w.T + b, 0.0)
    assert out.shape == (B, OUT)
    assert jnp.allclose(out, ref, atol=1e-5, rtol=1e-5)

    print("KERNEL_OK")
</pallas_src>

<mosaic_0001>
module attributes {stable_mosaic.version = 11 : i64} {
  func.func @linear_relu_kernel(%arg0: memref<8x10xf32, #tpu.memory_space<vmem>>, %arg1: memref<10x128xf32, #tpu.memory_space<vmem>>, %arg2: memref<1x128xf32, #tpu.memory_space<vmem>>, %arg3: memref<8x128xf32, #tpu.memory_space<vmem>>) attributes {dimension_semantics = [], scalar_prefetch = 0 : i64, scratch_operands = 0 : i64, tpu.core_type = #tpu.core_type<tc>} {
    %c0 = arith.constant 0 : index
    %c0_0 = arith.constant 0 : index
    %0 = vector.load %arg0[%c0, %c0_0] : memref<8x10xf32, #tpu.memory_space<vmem>>, vector<8x10xf32>
    %c0_1 = arith.constant 0 : index
    %c0_2 = arith.constant 0 : index
    %1 = vector.load %arg1[%c0_1, %c0_2] : memref<10x128xf32, #tpu.memory_space<vmem>>, vector<10x128xf32>
    %cst = arith.constant dense<0.000000e+00> : vector<8x128xf32>
    %2 = tpu.matmul %0, %1, %cst {dimension_numbers = #tpu.dot_dimension_numbers<[1], [0], [0], [1], [0, 0, 1, 1], [], []>} : vector<8x10xf32>, vector<10x128xf32>, vector<8x128xf32> -> vector<8x128xf32>
    %c0_3 = arith.constant 0 : index
    %c0_4 = arith.constant 0 : index
    %3 = vector.load %arg2[%c0_3, %c0_4] : memref<1x128xf32, #tpu.memory_space<vmem>>, vector<1x128xf32>
    %4 = vector.broadcast %3 : vector<1x128xf32> to vector<8x128xf32>
    %5 = arith.addf %2, %4 : vector<8x128xf32>
    %cst_5 = arith.constant 0.000000e+00 : f32
    %6 = vector.broadcast %cst_5 : f32 to vector<8x128xf32>
    %7 = arith.maximumf %5, %6 : vector<8x128xf32>
    %c0_6 = arith.constant 0 : index
    %c0_7 = arith.constant 0 : index
    %8 = vector.load %arg3[%c0_6, %c0_7] : memref<8x128xf32, #tpu.memory_space<vmem>>, vector<8x128xf32>
    tpu.vector_store %arg3[%c0_6, %c0_7], %7 {strides = array<i32>} : memref<8x128xf32, #tpu.memory_space<vmem>>, vector<8x128xf32>,
    return
  }
}

</mosaic_0001>

<llo_original>
// kernel: tpu_custom_call.1
$region0: #{tpu_custom_call.1}
  #allocation0 [shape = 'u32[]', space=smem, size = 0x4, offset = 0x4, fixed_abs, tag = 'smem constant byte address 0x4 - core index']
  #allocation1 [shape = 'u32[72,128]{1,0:T(1,128)}', space=vmem, size = 0x9000, scoped, tag = 'internal scratch']
  %s0 = inlined_call_operand.hbm [shape: f32[8,10], index: 0, kind: input, shape index: {}]
  %s1 = inlined_call_operand.hbm [shape: f32[10,128], index: 1, kind: input, shape index: {}]
  %s2 = inlined_call_operand.vmem [shape: f32[1,128], index: 2, kind: input, shape index: {}]
  %s3 = inlined_call_operand.hbm [shape: f32[8,128], index: 3, kind: output, shape index: {}]
  %s4 = sld [smem:[#allocation0]]
  $region30: #{tpu_custom_call.1} parent=0
    _
  %s6 = ssub.s32 1, %s4
  %s7 = scalar_select 0, %s6, %s4
  $region1: #{tpu_custom_call.1} parent=0
    #allocation2 [shape = 'u8[4096]{0}', space=vmem, size = 0x1000, scoped, tag = 'input window, operand 0, single buffered']
    #allocation3 [shape = 's32[1]{0}', space=sflag, size = 0x4, scoped, tag = 'scoped memory for tpu_custom_call.1']
    #allocation4 [shape = 's32[1]{0}', space=sflag, size = 0x4, scoped, tag = 'scoped memory for tpu_custom_call.1']
    #allocation5 [shape = 'u8[8192]{0}', space=vmem, size = 0x2000, scoped, tag = 'input window, operand 1, single buffered']
    #allocation6 [shape = 's32[1]{0}', space=sflag, size = 0x4, scoped, tag = 'scoped memory for tpu_custom_call.1']
    #allocation7 [shape = 'u8[4096]{0}', space=vmem, size = 0x1000, scoped, tag = 'output window, operand 0, single buffered']
    %8 = vsyncpa [#allocation3], 0
    %9 = vsyncpa [#allocation6], 0
    %10 = vsyncpa [#allocation4], 0
    // Predicated region
    $region2: #{tpu_custom_call.1} parent=1 // pred_check
      _
    $region3: #{tpu_custom_call.1} parent=1 // pred_check_branch
      %12 = sbr.rel (0) target = $region5
    $region4: #{tpu_custom_call.1} parent=1 // pred_region
      %14 = vsyncadd [#allocation3], 0
      %s16 = sshll.u32 %s0, 4
      %s17 = int_to_ptr.hbm [resolvable:$true] %s16
      %s18 = sshll.u32 [#allocation2], 4
      %s19 = int_to_ptr.vmem [resolvable:$true] %s18
      %21 = dma.hbm_to_vmem [thread:$0]  %s17, 128, %s19, [#allocation3]
    $region5: #{tpu_custom_call.1} parent=1 // pred_fallthru
      _
    // Predicated region
    $region6: #{tpu_custom_call.1} parent=1 // pred_check
      _
    $region7: #{tpu_custom_call.1} parent=1 // pred_check_branch
      %23 = sbr.rel (0) target = $region9
    $region8: #{tpu_custom_call.1} parent=1 // pred_region
      %25 = vsyncadd [#allocation6], 0
      %s26 = sshll.u32 %s1, 4
      %s27 = int_to_ptr.hbm [resolvable:$true] %s26
      %s28 = sshll.u32 [#allocation5], 4
      %s29 = int_to_ptr.vmem [resolvable:$true] %s28
      %34 = dma.hbm_to_vmem [thread:$0]  %s27, 256, %s29, [#allocation6], 128, 128, 8
    $region9: #{tpu_custom_call.1} parent=1 // pred_fallthru
      _
    // Predicated region
    $region10: #{tpu_custom_call.1} parent=1 // pred_check
      _
    $region11: #{tpu_custom_call.1} parent=1 // pred_check_branch
      %36 = sbr.rel (0) target = $region13
    $region12: #{tpu_custom_call.1} parent=1 // pred_region
      _
    $region13: #{tpu_custom_call.1} parent=1 // pred_fallthru
      _
    // Predicated region
    $region14: #{tpu_custom_call.1} parent=1 // pred_check
      _
    $region15: #{tpu_custom_call.1} parent=1 // pred_check_branch
      %38 = sbr.rel (0) target = $region17
    $region16: #{tpu_custom_call.1} parent=1 // pred_region
      %40 = dma.done [#allocation3], 128
    $region17: #{tpu_custom_call.1} parent=1 // pred_fallthru
      _
    // Predicated region
    $region18: #{tpu_custom_call.1} parent=1 // pred_check
      _
    $region19: #{tpu_custom_call.1} parent=1 // pred_check_branch
      %42 = sbr.rel (0) target = $region21
    $region20: #{tpu_custom_call.1} parent=1 // pred_region
      %44 = dma.done [#allocation6], 256
    $region21: #{tpu_custom_call.1} parent=1 // pred_fallthru
      _
    %v45 = vld [vmem:[#allocation2] sm:$0xff]
    %v46 = vld [vmem:[#allocation5] sm:$0xff]
    %v47 = vld [vmem:[#allocation5 + $0x8] sm:$0x3]
    %v48 = vld [vmem:[%s2] sm:$0x1]
    %v50 = vperm.slane %v48, 0
    %vm52 = vcmask 80896
    %v54 = vsel %vm52, %v45, 0
    %vm56 = vcmask 1041408
    %v58 = vsel %vm56, %v47, 0
    %60 = vmatpush.msra.mxu0 0.0
    %61 = vmatpush.msra.mxu0 0.0
    %62 = vmatpush.msra.mxu0 0.0
    %63 = vmatpush.msra.mxu0 0.0
    %64 = vmatpush.msra.mxu0 0.0
    %65 = vmatpush.msra.mxu0 0.0
    %66 = vmatpush.msra.mxu0 0.0
    %67 = vmatpush.msra.mxu0 0.0
    %68 = vmatpush.msra.mxu0 0.0
    %69 = vmatpush.msra.mxu0 0.0
    %70 = vmatpush.msra.mxu0 0.0
    %71 = vmatpush.msra.mxu0 0.0
    %72 = vmatpush.msra.mxu0 0.0
    %73 = vmatpush.msra.mxu0 0.0
    %74 = vmatpush.msra.mxu0 %v58
    %75 = vmatpush.msra.mxu0 %v46
    %76 = vmatmul.f32.gmra.mxu0 %v54
    %v77 = vpop.f32.mrf.mxu0
    %v78 = vadd.f32 %v50, %v77
    %79 = vdwg.mxu0
    %v80 = vmax.f32 %v78, 0.0
    %81 = vst [vmem:[#allocation7] sm:$0xff] %v80
    // Predicated region
    $region22: #{tpu_custom_call.1} parent=1 // pred_check
      _
    $region23: #{tpu_custom_call.1} parent=1 // pred_check_branch
      %83 = sbr.rel (0) target = $region25
    $region24: #{tpu_custom_call.1} parent=1 // pred_region
      %85 = vsyncadd [#allocation4], 0
      %s87 = sshll.u32 [#allocation7], 4
      %s88 = int_to_ptr.vmem [resolvable:$true] %s87
      %s89 = sshll.u32 %s3, 4
      %s90 = int_to_ptr.hbm [resolvable:$true] %s89
      %92 = dma.vmem_to_hbm [thread:$0]  %s88, 128, %s90, [#allocation4]
    $region25: #{tpu_custom_call.1} parent=1 // pred_fallthru
      _
    // Predicated region
    $region26: #{tpu_custom_call.1} parent=1 // pred_check
      _
    $region27: #{tpu_custom_call.1} parent=1 // pred_check_branch
      %94 = sbr.rel (0) target = $region29
    $region28: #{tpu_custom_call.1} parent=1 // pred_region
      %96 = dma.done [#allocation4], 128
    $region29: #{tpu_custom_call.1} parent=1 // pred_fallthru
      _
    %97 = vsyncpa [#allocation3], 1
    %98 = vsyncpa [#allocation6], 1
    %99 = vsyncpa [#allocation4], 1

</llo_original>
